<compile_context>
chip_gen: v5e
topology: v5e:2x2
jax: 0.10.0
libtpu: 0.0.40
codegen_flags: <defaults>
</compile_context>

<pallas_src>
import functools

import jax
import jax.numpy as jnp
from jax.experimental import pallas as pl
from jax.experimental.pallas import tpu as pltpu


def rnn_kernel(x_ref, wih0_ref, whh0_ref, b0_ref,
               wih_r_ref, whh_r_ref, b_r_ref,
               fcw_ref, fcb_ref,
               out_ref,
               *, num_layers, T, Bp):
    H = whh0_ref.shape[0]
    f32 = jnp.float32

    # ---- hoisted layer-0 input projection (one matmul, off the serial path) --
    proj0 = (jnp.dot(x_ref[...], wih0_ref[...], preferred_element_type=f32)
             + b0_ref[...])                                    # (T*Bp, H)

    # ---- load weights / pre-broadcast biases once (values live in vregs) ----
    whh = [whh0_ref[...]] + [whh_r_ref[l - 1] for l in range(1, num_layers)]
    wih_next = [wih_r_ref[l - 1] for l in range(1, num_layers)]
    b_next = [jnp.broadcast_to(b_r_ref[l - 1], (Bp, H))        # hoisted bcast
              for l in range(1, num_layers)]

    h = [jnp.zeros((Bp, H), f32) for _ in range(num_layers)]

    # ---- wavefront recurrence ------------------------------------------------
    # h[l][t] depends on h[l][t-1] and h[l-1][t] only; emitting t-outer /
    # l-inner exposes the (T + L - 1)-deep diagonal DAG to the scheduler, so
    # layer-l work at step t overlaps layer-(l-1) work at step t+1.
    for t in range(T):                                         # fully unrolled
        inp = proj0[t * Bp:(t + 1) * Bp, :]                    # (Bp, H)
        for l in range(num_layers):
            h[l] = jnp.tanh(inp + jnp.dot(h[l], whh[l],
                                          preferred_element_type=f32))
            if l + 1 < num_layers:
                # per-step input projection for the layer above (no barrier)
                inp = (jnp.dot(h[l], wih_next[l], preferred_element_type=f32)
                       + b_next[l])

    # ---- ReLU on last timestep of top layer + final Linear -------------------
    last = jnp.maximum(h[num_layers - 1], 0.0)                 # (Bp, H)
    # Full lane-aligned (Bp, Op) store; wrapper drops padding.
    out_ref[...] = (jnp.dot(last, fcw_ref[...], preferred_element_type=f32)
                    + fcb_ref[...])


def rnn_forward(x, params, num_layers):
    """x: (B, T, I) float32  ->  (B, output_size) float32"""
    B, T, I = x.shape
    H = params["whh0"].shape[0]
    O = params["fcw"].shape[1]

    Bp = ((B + 7) // 8) * 8          # sublane-aligned batch
    Op = ((O + 127) // 128) * 128    # lane-aligned output width -> unmasked vst

    x_p = jnp.pad(x, ((0, Bp - B), (0, 0), (0, 0)))
    # Time-major, flattened: rows [t*Bp : (t+1)*Bp] are timestep t, all batch.
    # (Negligible wrapper cost at these shapes; fold into the kernel if B*T*I
    # ever scales enough for the extra HBM round trip to matter.)
    x_flat = jnp.transpose(x_p, (1, 0, 2)).reshape(T * Bp, I)

    # Pre-sum biases (b_ih + b_hh) once per layer.
    b0 = params["bih0"] + params["bhh0"]                       # (1, H)
    b_r = params["bih_r"] + params["bhh_r"]                    # (L-1, 1, H)

    # Pad the FC weight/bias along the output dim for a lane-dense store.
    fcw_p = jnp.pad(params["fcw"], ((0, 0), (0, Op - O)))
    fcb_p = jnp.pad(params["fcb"], ((0, 0), (0, Op - O)))

    inputs = (x_flat,
              params["wih0"], params["whh0"], b0,
              params["wih_r"], params["whh_r"], b_r,
              fcw_p, fcb_p)

    vmem = pl.BlockSpec(memory_space=pltpu.MemorySpace.VMEM)
    out_p = pl.pallas_call(
        functools.partial(rnn_kernel, num_layers=num_layers, T=T, Bp=Bp),
        out_shape=jax.ShapeDtypeStruct((Bp, Op), jnp.float32),
        in_specs=[vmem] * len(inputs),
        out_specs=vmem,
    )(*inputs)
    return out_p[:B, :O]                                       # drop padding


def rnn_reference(x, params, num_layers):
    """Pure-JAX reference matching torch.nn.RNN(batch_first=True) + ReLU + Linear."""
    B, T, _ = x.shape
    H = params["whh0"].shape[0]
    seq = x
    for l in range(num_layers):
        if l == 0:
            wih, whh = params["wih0"], params["whh0"]
            bih, bhh = params["bih0"], params["bhh0"]
        else:
            wih, whh = params["wih_r"][l - 1], params["whh_r"][l - 1]
            bih, bhh = params["bih_r"][l - 1], params["bhh_r"][l - 1]
        h = jnp.zeros((B, H), jnp.float32)
        outs = []
        for t in range(T):
            h = jnp.tanh(seq[:, t, :] @ wih + bih + h @ whh + bhh)
            outs.append(h)
        seq = jnp.stack(outs, axis=1)
    last = jnp.maximum(seq[:, -1, :], 0.0)
    return last @ params["fcw"] + params["fcb"]


if __name__ == "__main__":
    # Small shapes consistent with the module's forward:
    #   input_size=16, hidden_size=32, num_layers=2, output_size=10
    B, T, I, H, O, L = 2, 8, 16, 32, 10, 2

    key = jax.random.PRNGKey(0)
    keys = jax.random.split(key, 11)
    k_rnn = float(1.0 / jnp.sqrt(H))   # PyTorch RNN init bound
    k_fc = float(1.0 / jnp.sqrt(H))    # PyTorch Linear init bound (in_features = H)

    def u(kk, shape, bound):
        return jax.random.uniform(kk, shape, jnp.float32, -bound, bound)

    params = dict(
        wih0=u(keys[0], (I, H), k_rnn),                      # = weight_ih_l0^T
        whh0=u(keys[1], (H, H), k_rnn),                      # = weight_hh_l0^T
        bih0=u(keys[2], (1, H), k_rnn),
        bhh0=u(keys[3], (1, H), k_rnn),
        wih_r=u(keys[4], (max(L - 1, 1), H, H), k_rnn),      # layers 1..L-1
        whh_r=u(keys[5], (max(L - 1, 1), H, H), k_rnn),
        bih_r=u(keys[6], (max(L - 1, 1), 1, H), k_rnn),
        bhh_r=u(keys[7], (max(L - 1, 1), 1, H), k_rnn),
        fcw=u(keys[8], (H, O), k_fc),                        # = fc.weight^T
        fcb=u(keys[9], (1, O), k_fc),
    )

    x = jax.random.normal(keys[10], (B, T, I), jnp.float32)

    out = rnn_forward(x, params, L)
    jax.block_until_ready(out)

    ref = rnn_reference(x, params, L)
    assert out.shape == (B, O), out.shape
    assert jnp.allclose(out, ref, atol=1e-4, rtol=1e-4), (
        "mismatch vs reference: max abs err = "
        f"{float(jnp.max(jnp.abs(out - ref)))}")

    print("KERNEL_OK")
</pallas_src>

<mosaic_0001>
module attributes {stable_mosaic.version = 11 : i64} {
  func.func @rnn_kernel(%arg0: memref<64x16xf32, #tpu.memory_space<vmem>>, %arg1: memref<16x32xf32, #tpu.memory_space<vmem>>, %arg2: memref<32x32xf32, #tpu.memory_space<vmem>>, %arg3: memref<1x32xf32, #tpu.memory_space<vmem>>, %arg4: memref<1x32x32xf32, #tpu.memory_space<vmem>>, %arg5: memref<1x32x32xf32, #tpu.memory_space<vmem>>, %arg6: memref<1x1x32xf32, #tpu.memory_space<vmem>>, %arg7: memref<32x128xf32, #tpu.memory_space<vmem>>, %arg8: memref<1x128xf32, #tpu.memory_space<vmem>>, %arg9: memref<8x128xf32, #tpu.memory_space<vmem>>) attributes {dimension_semantics = [], scalar_prefetch = 0 : i64, scratch_operands = 0 : i64, tpu.core_type = #tpu.core_type<tc>} {
    %c0 = arith.constant 0 : index
    %c0_0 = arith.constant 0 : index
    %0 = vector.load %arg0[%c0, %c0_0] : memref<64x16xf32, #tpu.memory_space<vmem>>, vector<64x16xf32>
    %c0_1 = arith.constant 0 : index
    %c0_2 = arith.constant 0 : index
    %1 = vector.load %arg1[%c0_1, %c0_2] : memref<16x32xf32, #tpu.memory_space<vmem>>, vector<16x32xf32>
    %cst = arith.constant dense<0.000000e+00> : vector<64x32xf32>
    %2 = tpu.matmul %0, %1, %cst {dimension_numbers = #tpu.dot_dimension_numbers<[1], [0], [0], [1], [0, 0, 1, 1], [], []>} : vector<64x16xf32>, vector<16x32xf32>, vector<64x32xf32> -> vector<64x32xf32>
    %c0_3 = arith.constant 0 : index
    %c0_4 = arith.constant 0 : index
    %3 = vector.load %arg3[%c0_3, %c0_4] : memref<1x32xf32, #tpu.memory_space<vmem>>, vector<1x32xf32>
    %4 = vector.broadcast %3 : vector<1x32xf32> to vector<64x32xf32>
    %5 = arith.addf %2, %4 : vector<64x32xf32>
    %c0_5 = arith.constant 0 : index
    %c0_6 = arith.constant 0 : index
    %6 = vector.load %arg2[%c0_5, %c0_6] : memref<32x32xf32, #tpu.memory_space<vmem>>, vector<32x32xf32>
    %c0_7 = arith.constant 0 : index
    %c0_8 = arith.constant 0 : index
    %c0_9 = arith.constant 0 : index
    %7 = vector.load %arg5[%c0_7, %c0_8, %c0_9] : memref<1x32x32xf32, #tpu.memory_space<vmem>>, vector<1x32x32xf32>
    %8 = vector.shape_cast %7 : vector<1x32x32xf32> to vector<32x32xf32>
    %c0_10 = arith.constant 0 : index
    %c0_11 = arith.constant 0 : index
    %c0_12 = arith.constant 0 : index
    %9 = vector.load %arg4[%c0_10, %c0_11, %c0_12] : memref<1x32x32xf32, #tpu.memory_space<vmem>>, vector<1x32x32xf32>
    %10 = vector.shape_cast %9 : vector<1x32x32xf32> to vector<32x32xf32>
    %c0_13 = arith.constant 0 : index
    %c0_14 = arith.constant 0 : index
    %c0_15 = arith.constant 0 : index
    %11 = vector.load %arg6[%c0_13, %c0_14, %c0_15] : memref<1x1x32xf32, #tpu.memory_space<vmem>>, vector<1x1x32xf32>
    %12 = vector.shape_cast %11 : vector<1x1x32xf32> to vector<1x32xf32>
    %13 = vector.shape_cast %12 : vector<1x32xf32> to vector<1x32xf32>
    %14 = vector.broadcast %13 : vector<1x32xf32> to vector<8x32xf32>
    %cst_16 = arith.constant 0.000000e+00 : f32
    %15 = vector.broadcast %cst_16 : f32 to vector<8x32xf32>
    %cst_17 = arith.constant 0.000000e+00 : f32
    %16 = vector.broadcast %cst_17 : f32 to vector<8x32xf32>
    %17 = vector.extract_strided_slice %5 {offsets = [0, 0], sizes = [8, 32], strides = [1, 1]} : vector<64x32xf32> to vector<8x32xf32>
    %cst_18 = arith.constant dense<0.000000e+00> : vector<8x32xf32>
    %18 = tpu.matmul %15, %6, %cst_18 {dimension_numbers = #tpu.dot_dimension_numbers<[1], [0], [0], [1], [0, 0, 1, 1], [], []>} : vector<8x32xf32>, vector<32x32xf32>, vector<8x32xf32> -> vector<8x32xf32>
    %19 = arith.addf %17, %18 : vector<8x32xf32>
    %20 = math.tanh %19 : vector<8x32xf32>
    %cst_19 = arith.constant dense<0.000000e+00> : vector<8x32xf32>
    %21 = tpu.matmul %20, %10, %cst_19 {dimension_numbers = #tpu.dot_dimension_numbers<[1], [0], [0], [1], [0, 0, 1, 1], [], []>} : vector<8x32xf32>, vector<32x32xf32>, vector<8x32xf32> -> vector<8x32xf32>
    %22 = arith.addf %21, %14 : vector<8x32xf32>
    %cst_20 = arith.constant dense<0.000000e+00> : vector<8x32xf32>
    %23 = tpu.matmul %16, %8, %cst_20 {dimension_numbers = #tpu.dot_dimension_numbers<[1], [0], [0], [1], [0, 0, 1, 1], [], []>} : vector<8x32xf32>, vector<32x32xf32>, vector<8x32xf32> -> vector<8x32xf32>
    %24 = arith.addf %22, %23 : vector<8x32xf32>
    %25 = math.tanh %24 : vector<8x32xf32>
    %26 = vector.extract_strided_slice %5 {offsets = [8, 0], sizes = [8, 32], strides = [1, 1]} : vector<64x32xf32> to vector<8x32xf32>
    %cst_21 = arith.constant dense<0.000000e+00> : vector<8x32xf32>
    %27 = tpu.matmul %20, %6, %cst_21 {dimension_numbers = #tpu.dot_dimension_numbers<[1], [0], [0], [1], [0, 0, 1, 1], [], []>} : vector<8x32xf32>, vector<32x32xf32>, vector<8x32xf32> -> vector<8x32xf32>
    %28 = arith.addf %26, %27 : vector<8x32xf32>
    %29 = math.tanh %28 : vector<8x32xf32>
    %cst_22 = arith.constant dense<0.000000e+00> : vector<8x32xf32>
    %30 = tpu.matmul %29, %10, %cst_22 {dimension_numbers = #tpu.dot_dimension_numbers<[1], [0], [0], [1], [0, 0, 1, 1], [], []>} : vector<8x32xf32>, vector<32x32xf32>, vector<8x32xf32> -> vector<8x32xf32>
    %31 = arith.addf %30, %14 : vector<8x32xf32>
    %cst_23 = arith.constant dense<0.000000e+00> : vector<8x32xf32>
    %32 = tpu.matmul %25, %8, %cst_23 {dimension_numbers = #tpu.dot_dimension_numbers<[1], [0], [0], [1], [0, 0, 1, 1], [], []>} : vector<8x32xf32>, vector<32x32xf32>, vector<8x32xf32> -> vector<8x32xf32>
    %33 = arith.addf %31, %32 : vector<8x32xf32>
    %34 = math.tanh %33 : vector<8x32xf32>
    %35 = vector.extract_strided_slice %5 {offsets = [16, 0], sizes = [8, 32], strides = [1, 1]} : vector<64x32xf32> to vector<8x32xf32>
    %cst_24 = arith.constant dense<0.000000e+00> : vector<8x32xf32>
    %36 = tpu.matmul %29, %6, %cst_24 {dimension_numbers = #tpu.dot_dimension_numbers<[1], [0], [0], [1], [0, 0, 1, 1], [], []>} : vector<8x32xf32>, vector<32x32xf32>, vector<8x32xf32> -> vector<8x32xf32>
    %37 = arith.addf %35, %36 : vector<8x32xf32>
    %38 = math.tanh %37 : vector<8x32xf32>
    %cst_25 = arith.constant dense<0.000000e+00> : vector<8x32xf32>
    %39 = tpu.matmul %38, %10, %cst_25 {dimension_numbers = #tpu.dot_dimension_numbers<[1], [0], [0], [1], [0, 0, 1, 1], [], []>} : vector<8x32xf32>, vector<32x32xf32>, vector<8x32xf32> -> vector<8x32xf32>
    %40 = arith.addf %39, %14 : vector<8x32xf32>
    %cst_26 = arith.constant dense<0.000000e+00> : vector<8x32xf32>
    %41 = tpu.matmul %34, %8, %cst_26 {dimension_numbers = #tpu.dot_dimension_numbers<[1], [0], [0], [1], [0, 0, 1, 1], [], []>} : vector<8x32xf32>, vector<32x32xf32>, vector<8x32xf32> -> vector<8x32xf32>
    %42 = arith.addf %40, %41 : vector<8x32xf32>
    %43 = math.tanh %42 : vector<8x32xf32>
    %44 = vector.extract_strided_slice %5 {offsets = [24, 0], sizes = [8, 32], strides = [1, 1]} : vector<64x32xf32> to vector<8x32xf32>
    %cst_27 = arith.constant dense<0.000000e+00> : vector<8x32xf32>
    %45 = tpu.matmul %38, %6, %cst_27 {dimension_numbers = #tpu.dot_dimension_numbers<[1], [0], [0], [1], [0, 0, 1, 1], [], []>} : vector<8x32xf32>, vector<32x32xf32>, vector<8x32xf32> -> vector<8x32xf32>
    %46 = arith.addf %44, %45 : vector<8x32xf32>
    %47 = math.tanh %46 : vector<8x32xf32>
    %cst_28 = arith.constant dense<0.000000e+00> : vector<8x32xf32>
    %48 = tpu.matmul %47, %10, %cst_28 {dimension_numbers = #tpu.dot_dimension_numbers<[1], [0], [0], [1], [0, 0, 1, 1], [], []>} : vector<8x32xf32>, vector<32x32xf32>, vector<8x32xf32> -> vector<8x32xf32>
    %49 = arith.addf %48, %14 : vector<8x32xf32>
    %cst_29 = arith.constant dense<0.000000e+00> : vector<8x32xf32>
    %50 = tpu.matmul %43, %8, %cst_29 {dimension_numbers = #tpu.dot_dimension_numbers<[1], [0], [0], [1], [0, 0, 1, 1], [], []>} : vector<8x32xf32>, vector<32x32xf32>, vector<8x32xf32> -> vector<8x32xf32>
    %51 = arith.addf %49, %50 : vector<8x32xf32>
    %52 = math.tanh %51 : vector<8x32xf32>
    %53 = vector.extract_strided_slice %5 {offsets = [32, 0], sizes = [8, 32], strides = [1, 1]} : vector<64x32xf32> to vector<8x32xf32>
    %cst_30 = arith.constant dense<0.000000e+00> : vector<8x32xf32>
    %54 = tpu.matmul %47, %6, %cst_30 {dimension_numbers = #tpu.dot_dimension_numbers<[1], [0], [0], [1], [0, 0, 1, 1], [], []>} : vector<8x32xf32>, vector<32x32xf32>, vector<8x32xf32> -> vector<8x32xf32>
    %55 = arith.addf %53, %54 : vector<8x32xf32>
    %56 = math.tanh %55 : vector<8x32xf32>
    %cst_31 = arith.constant dense<0.000000e+00> : vector<8x32xf32>
    %57 = tpu.matmul %56, %10, %cst_31 {dimension_numbers = #tpu.dot_dimension_numbers<[1], [0], [0], [1], [0, 0, 1, 1], [], []>} : vector<8x32xf32>, vector<32x32xf32>, vector<8x32xf32> -> vector<8x32xf32>
    %58 = arith.addf %57, %14 : vector<8x32xf32>
    %cst_32 = arith.constant dense<0.000000e+00> : vector<8x32xf32>
    %59 = tpu.matmul %52, %8, %cst_32 {dimension_numbers = #tpu.dot_dimension_numbers<[1], [0], [0], [1], [0, 0, 1, 1], [], []>} : vector<8x32xf32>, vector<32x32xf32>, vector<8x32xf32> -> vector<8x32xf32>
    %60 = arith.addf %58, %59 : vector<8x32xf32>
    %61 = math.tanh %60 : vector<8x32xf32>
    %62 = vector.extract_strided_slice %5 {offsets = [40, 0], sizes = [8, 32], strides = [1, 1]} : vector<64x32xf32> to vector<8x32xf32>
    %cst_33 = arith.constant dense<0.000000e+00> : vector<8x32xf32>
    %63 = tpu.matmul %56, %6, %cst_33 {dimension_numbers = #tpu.dot_dimension_numbers<[1], [0], [0], [1], [0, 0, 1, 1], [], []>} : vector<8x32xf32>, vector<32x32xf32>, vector<8x32xf32> -> vector<8x32xf32>
    %64 = arith.addf %62, %63 : vector<8x32xf32>
    %65 = math.tanh %64 : vector<8x32xf32>
    %cst_34 = arith.constant dense<0.000000e+00> : vector<8x32xf32>
    %66 = tpu.matmul %65, %10, %cst_34 {dimension_numbers = #tpu.dot_dimension_numbers<[1], [0], [0], [1], [0, 0, 1, 1], [], []>} : vector<8x32xf32>, vector<32x32xf32>, vector<8x32xf32> -> vector<8x32xf32>
    %67 = arith.addf %66, %14 : vector<8x32xf32>
    %cst_35 = arith.constant dense<0.000000e+00> : vector<8x32xf32>
    %68 = tpu.matmul %61, %8, %cst_35 {dimension_numbers = #tpu.dot_dimension_numbers<[1], [0], [0], [1], [0, 0, 1, 1], [], []>} : vector<8x32xf32>, vector<32x32xf32>, vector<8x32xf32> -> vector<8x32xf32>
    %69 = arith.addf %67, %68 : vector<8x32xf32>
    %70 = math.tanh %69 : vector<8x32xf32>
    %71 = vector.extract_strided_slice %5 {offsets = [48, 0], sizes = [8, 32], strides = [1, 1]} : vector<64x32xf32> to vector<8x32xf32>
    %cst_36 = arith.constant dense<0.000000e+00> : vector<8x32xf32>
    %72 = tpu.matmul %65, %6, %cst_36 {dimension_numbers = #tpu.dot_dimension_numbers<[1], [0], [0], [1], [0, 0, 1, 1], [], []>} : vector<8x32xf32>, vector<32x32xf32>, vector<8x32xf32> -> vector<8x32xf32>
    %73 = arith.addf %71, %72 : vector<8x32xf32>
    %74 = math.tanh %73 : vector<8x32xf32>
    %cst_37 = arith.constant dense<0.000000e+00> : vector<8x32xf32>
    %75 = tpu.matmul %74, %10, %cst_37 {dimension_numbers = #tpu.dot_dimension_numbers<[1], [0], [0], [1], [0, 0, 1, 1], [], []>} : vector<8x32xf32>, vector<32x32xf32>, vector<8x32xf32> -> vector<8x32xf32>
    %76 = arith.addf %75, %14 : vector<8x32xf32>
    %cst_38 = arith.constant dense<0.000000e+00> : vector<8x32xf32>
    %77 = tpu.matmul %70, %8, %cst_38 {dimension_numbers = #tpu.dot_dimension_numbers<[1], [0], [0], [1], [0, 0, 1, 1], [], []>} : vector<8x32xf32>, vector<32x32xf32>, vector<8x32xf32> -> vector<8x32xf32>
    %78 = arith.addf %76, %77 : vector<8x32xf32>
    %79 = math.tanh %78 : vector<8x32xf32>
    %80 = vector.extract_strided_slice %5 {offsets = [56, 0], sizes = [8, 32], strides = [1, 1]} : vector<64x32xf32> to vector<8x32xf32>
    %cst_39 = arith.constant dense<0.000000e+00> : vector<8x32xf32>
    %81 = tpu.matmul %74, %6, %cst_39 {dimension_numbers = #tpu.dot_dimension_numbers<[1], [0], [0], [1], [0, 0, 1, 1], [], []>} : vector<8x32xf32>, vector<32x32xf32>, vector<8x32xf32> -> vector<8x32xf32>
    %82 = arith.addf %80, %81 : vector<8x32xf32>
    %83 = math.tanh %82 : vector<8x32xf32>
    %cst_40 = arith.constant dense<0.000000e+00> : vector<8x32xf32>
    %84 = tpu.matmul %83, %10, %cst_40 {dimension_numbers = #tpu.dot_dimension_numbers<[1], [0], [0], [1], [0, 0, 1, 1], [], []>} : vector<8x32xf32>, vector<32x32xf32>, vector<8x32xf32> -> vector<8x32xf32>
    %85 = arith.addf %84, %14 : vector<8x32xf32>
    %cst_41 = arith.constant dense<0.000000e+00> : vector<8x32xf32>
    %86 = tpu.matmul %79, %8, %cst_41 {dimension_numbers = #tpu.dot_dimension_numbers<[1], [0], [0], [1], [0, 0, 1, 1], [], []>} : vector<8x32xf32>, vector<32x32xf32>, vector<8x32xf32> -> vector<8x32xf32>
    %87 = arith.addf %85, %86 : vector<8x32xf32>
    %88 = math.tanh %87 : vector<8x32xf32>
    %cst_42 = arith.constant 0.000000e+00 : f32
    %89 = vector.broadcast %cst_42 : f32 to vector<8x32xf32>
    %90 = arith.maximumf %88, %89 : vector<8x32xf32>
    %c0_43 = arith.constant 0 : index
    %c0_44 = arith.constant 0 : index
    %91 = vector.load %arg7[%c0_43, %c0_44] : memref<32x128xf32, #tpu.memory_space<vmem>>, vector<32x128xf32>
    %cst_45 = arith.constant dense<0.000000e+00> : vector<8x128xf32>
    %92 = tpu.matmul %90, %91, %cst_45 {dimension_numbers = #tpu.dot_dimension_numbers<[1], [0], [0], [1], [0, 0, 1, 1], [], []>} : vector<8x32xf32>, vector<32x128xf32>, vector<8x128xf32> -> vector<8x128xf32>
    %c0_46 = arith.constant 0 : index
    %c0_47 = arith.constant 0 : index
    %93 = vector.load %arg8[%c0_46, %c0_47] : memref<1x128xf32, #tpu.memory_space<vmem>>, vector<1x128xf32>
    %94 = vector.broadcast %93 : vector<1x128xf32> to vector<8x128xf32>
    %95 = arith.addf %92, %94 : vector<8x128xf32>
    %c0_48 = arith.constant 0 : index
    %c0_49 = arith.constant 0 : index
    %96 = vector.load %arg9[%c0_48, %c0_49] : memref<8x128xf32, #tpu.memory_space<vmem>>, vector<8x128xf32>
    tpu.vector_store %arg9[%c0_48, %c0_49], %95 {strides = array<i32>} : memref<8x128xf32, #tpu.memory_space<vmem>>, vector<8x128xf32>,
    return
  }
}

</mosaic_0001>

<llo_original>
// kernel: tpu_custom_call.1
$region0: #{tpu_custom_call.1}
  #allocation0 [shape = 'u32[]', space=smem, size = 0x4, offset = 0x4, fixed_abs, tag = 'smem constant byte address 0x4 - core index']
  #allocation1 [shape = 'u32[72,128]{1,0:T(1,128)}', space=vmem, size = 0x9000, scoped, tag = 'internal scratch']
  %s0 = inlined_call_operand.vmem [shape: f32[64,16], index: 0, kind: input, shape index: {}]
  %s1 = inlined_call_operand.vmem [shape: f32[16,32], index: 1, kind: input, shape index: {}]
  %s2 = inlined_call_operand.vmem [shape: f32[32,32], index: 2, kind: input, shape index: {}]
  %s3 = inlined_call_operand.vmem [shape: f32[1,32], index: 3, kind: input, shape index: {}]
  %s4 = inlined_call_operand.vmem [shape: f32[1,32,32], index: 4, kind: input, shape index: {}]
  %s5 = inlined_call_operand.hbm [shape: f32[1,32,32], index: 5, kind: input, shape index: {}]
  %s6 = inlined_call_operand.vmem [shape: f32[1,1,32], index: 6, kind: input, shape index: {}]
  %s7 = inlined_call_operand.hbm [shape: f32[32,128], index: 7, kind: input, shape index: {}]
  %s8 = inlined_call_operand.vmem [shape: f32[1,128], index: 8, kind: input, shape index: {}]
  %s9 = inlined_call_operand.hbm [shape: f32[8,128], index: 9, kind: output, shape index: {}]
  %s10 = sld [smem:[#allocation0]]
  $region54: #{tpu_custom_call.1} parent=0
    _
  %s12 = ssub.s32 1, %s10
  %s13 = scalar_select 0, %s12, %s10
  $region1: #{tpu_custom_call.1} parent=0
    #allocation2 [shape = 'u8[16384]{0}', space=vmem, size = 0x4000, scoped, tag = 'input window, operand 5, single buffered']
    #allocation3 [shape = 's32[1]{0}', space=sflag, size = 0x4, scoped, tag = 'scoped memory for tpu_custom_call.1']
    #allocation4 [shape = 's32[1]{0}', space=sflag, size = 0x4, scoped, tag = 'scoped memory for tpu_custom_call.1']
    #allocation5 [shape = 'u8[16384]{0}', space=vmem, size = 0x4000, scoped, tag = 'input window, operand 7, single buffered']
    #allocation6 [shape = 's32[1]{0}', space=sflag, size = 0x4, scoped, tag = 'scoped memory for tpu_custom_call.1']
    #allocation7 [shape = 'u8[4096]{0}', space=vmem, size = 0x1000, scoped, tag = 'output window, operand 0, single buffered']
    %14 = vsyncpa [#allocation3], 0
    %15 = vsyncpa [#allocation6], 0
    %16 = vsyncpa [#allocation4], 0
    // Predicated region
    $region2: #{tpu_custom_call.1} parent=1 // pred_check
      _
    $region3: #{tpu_custom_call.1} parent=1 // pred_check_branch
      %18 = sbr.rel (0) target = $region5
    $region4: #{tpu_custom_call.1} parent=1 // pred_region
      _
    $region5: #{tpu_custom_call.1} parent=1 // pred_fallthru
      _
    // Predicated region
    $region6: #{tpu_custom_call.1} parent=1 // pred_check
      _
    $region7: #{tpu_custom_call.1} parent=1 // pred_check_branch
      %20 = sbr.rel (0) target = $region9
    $region8: #{tpu_custom_call.1} parent=1 // pred_region
      _
    $region9: #{tpu_custom_call.1} parent=1 // pred_fallthru
      _
    // Predicated region
    $region10: #{tpu_custom_call.1} parent=1 // pred_check
      _
    $region11: #{tpu_custom_call.1} parent=1 // pred_check_branch
      %22 = sbr.rel (0) target = $region13
    $region12: #{tpu_custom_call.1} parent=1 // pred_region
      _
    $region13: #{tpu_custom_call.1} parent=1 // pred_fallthru
      _
    // Predicated region
    $region14: #{tpu_custom_call.1} parent=1 // pred_check
      _
    $region15: #{tpu_custom_call.1} parent=1 // pred_check_branch
      %24 = sbr.rel (0) target = $region17
    $region16: #{tpu_custom_call.1} parent=1 // pred_region
      _
    $region17: #{tpu_custom_call.1} parent=1 // pred_fallthru
      _
    // Predicated region
    $region18: #{tpu_custom_call.1} parent=1 // pred_check
      _
    $region19: #{tpu_custom_call.1} parent=1 // pred_check_branch
      %26 = sbr.rel (0) target = $region21
    $region20: #{tpu_custom_call.1} parent=1 // pred_region
      _
    $region21: #{tpu_custom_call.1} parent=1 // pred_fallthru
      _
    // Predicated region
    $region22: #{tpu_custom_call.1} parent=1 // pred_check
      _
    $region23: #{tpu_custom_call.1} parent=1 // pred_check_branch
      %28 = sbr.rel (0) target = $region25
    $region24: #{tpu_custom_call.1} parent=1 // pred_region
      %30 = vsyncadd [#allocation3], 0
      %s31 = sshll.u32 %s5, 4
      %s32 = int_to_ptr.hbm [resolvable:$true] %s31
      %s33 = sshll.u32 [#allocation2], 4
      %s34 = int_to_ptr.vmem [resolvable:$true] %s33
      %39 = dma.hbm_to_vmem [thread:$0]  %s32, 512, %s34, [#allocation3], 128, 128, 8
    $region25: #{tpu_custom_call.1} parent=1 // pred_fallthru
      _
    // Predicated region
    $region26: #{tpu_custom_call.1} parent=1 // pred_check
      _
    $region27: #{tpu_custom_call.1} parent=1 // pred_check_branch
      %41 = sbr.rel (0) target = $region29
    $region28: #{tpu_custom_call.1} parent=1 // pred_region
      _
    $region29: #{tpu_custom_call.1} parent=1 // pred_fallthru
      _
    // Predicated region
    $region30: #{tpu_custom_call.1} parent=1 // pred_check
      _
    $region31: #{tpu_custom_call.1} parent=1 // pred_check_branch
      %43 = sbr.rel (0) target = $region33
    $region32: #{tpu_custom_call.1} parent=1 // pred_region
      %45 = vsyncadd [#allocation6], 0
      %s46 = sshll.u32 %s7, 4
      %s47 = int_to_ptr.hbm [resolvable:$true] %s46
      %s48 = sshll.u32 [#allocation5], 4
      %s49 = int_to_ptr.vmem [resolvable:$true] %s48
      %54 = dma.hbm_to_vmem [thread:$0]  %s47, 512, %s49, [#allocation6], 128, 128, 8
    $region33: #{tpu_custom_call.1} parent=1 // pred_fallthru
      _
    // Predicated region
    $region34: #{tpu_custom_call.1} parent=1 // pred_check
      _
    $region35: #{tpu_custom_call.1} parent=1 // pred_check_branch
      %56 = sbr.rel (0) target = $region37
    $region36: #{tpu_custom_call.1} parent=1 // pred_region
      _
    $region37: #{tpu_custom_call.1} parent=1 // pred_fallthru
      _
    // Predicated region
    $region38: #{tpu_custom_call.1} parent=1 // pred_check
      _
    $region39: #{tpu_custom_call.1} parent=1 // pred_check_branch
      %58 = sbr.rel (0) target = $region41
    $region40: #{tpu_custom_call.1} parent=1 // pred_region
      %60 = dma.done [#allocation3], 512
    $region41: #{tpu_custom_call.1} parent=1 // pred_fallthru
      _
    // Predicated region
    $region42: #{tpu_custom_call.1} parent=1 // pred_check
      _
    $region43: #{tpu_custom_call.1} parent=1 // pred_check_branch
      %62 = sbr.rel (0) target = $region45
    $region44: #{tpu_custom_call.1} parent=1 // pred_region
      %64 = dma.done [#allocation6], 512
    $region45: #{tpu_custom_call.1} parent=1 // pred_fallthru
      _
    %v65 = vld [vmem:[%s0] sm:$0xff]
    %v66 = vld [vmem:[%s0 + $0x8] sm:$0xff]
    %v67 = vld [vmem:[%s0 + $0x10] sm:$0xff]
    %v68 = vld [vmem:[%s0 + $0x18] sm:$0xff]
    %v69 = vld [vmem:[%s0 + $0x20] sm:$0xff]
    %v70 = vld [vmem:[%s0 + $0x28] sm:$0xff]
    %v71 = vld [vmem:[%s0 + $0x30] sm:$0xff]
    %v72 = vld [vmem:[%s0 + $0x38] sm:$0xff]
    %v73 = vld [vmem:[%s1] sm:$0xff]
    %v74 = vld [vmem:[%s1 + $0x8] sm:$0xff]
    %v75 = vld [vmem:[%s3] sm:$0x1]
    %v77 = vperm.slane %v75, 0
    %vm79 = vcmask 130048
    %v81 = vsel %vm79, %v65, 0
    %v84 = vsel %vm79, %v66, 0
    %v87 = vsel %vm79, %v67, 0
    %v90 = vsel %vm79, %v68, 0
    %v93 = vsel %vm79, %v69, 0
    %v96 = vsel %vm79, %v70, 0
    %v99 = vsel %vm79, %v71, 0
    %v102 = vsel %vm79, %v72, 0
    %104 = vmatpush.msra.mxu0 0.0
    %105 = vmatpush.msra.mxu0 0.0
    %106 = vmatpush.msra.mxu0 0.0
    %107 = vmatpush.msra.mxu0 0.0
    %108 = vmatpush.msra.mxu0 0.0
    %109 = vmatpush.msra.mxu0 0.0
    %110 = vmatpush.msra.mxu0 0.0
    %111 = vmatpush.msra.mxu0 0.0
    %112 = vmatpush.msra.mxu0 0.0
    %113 = vmatpush.msra.mxu0 0.0
    %114 = vmatpush.msra.mxu0 0.0
    %115 = vmatpush.msra.mxu0 0.0
    %116 = vmatpush.msra.mxu0 0.0
    %117 = vmatpush.msra.mxu0 0.0
    %118 = vmatpush.msra.mxu0 %v74
    %119 = vmatpush.msra.mxu0 %v73
    %120 = vmatmul.f32.gmra.mxu0 %v81
    %v121 = vpop.f32.mrf.mxu0
    %v122 = vadd.f32 %v77, %v121
    %123 = vmatmul.f32.gmra.mxu0 %v84
    %v124 = vpop.f32.mrf.mxu0
    %v125 = vadd.f32 %v77, %v124
    %126 = vmatmul.f32.gmra.mxu0 %v87
    %v127 = vpop.f32.mrf.mxu0
    %v128 = vadd.f32 %v77, %v127
    %129 = vmatmul.f32.gmra.mxu0 %v90
    %v130 = vpop.f32.mrf.mxu0
    %v131 = vadd.f32 %v77, %v130
    %132 = vmatmul.f32.gmra.mxu0 %v93
    %v133 = vpop.f32.mrf.mxu0
    %v134 = vadd.f32 %v77, %v133
    %135 = vmatmul.f32.gmra.mxu0 %v96
    %v136 = vpop.f32.mrf.mxu0
    %v137 = vadd.f32 %v77, %v136
    %138 = vmatmul.f32.gmra.mxu0 %v99
    %v139 = vpop.f32.mrf.mxu0
    %v140 = vadd.f32 %v77, %v139
    %141 = vmatmul.f32.gmra.mxu0 %v102
    %v142 = vpop.f32.mrf.mxu0
    %v143 = vadd.f32 %v77, %v142
    %144 = vdwg.mxu0
    %v145 = vld [vmem:[%s2] sm:$0xff]
    %v146 = vld [vmem:[%s2 + $0x8] sm:$0xff]
    %v147 = vld [vmem:[%s2 + $0x10] sm:$0xff]
    %v148 = vld [vmem:[%s2 + $0x18] sm:$0xff]
    %v149 = vld [vmem:[#allocation2] sm:$0xff]
    %v150 = vld [vmem:[#allocation2 + $0x8] sm:$0xff]
    %v151 = vld [vmem:[#allocation2 + $0x10] sm:$0xff]
    %v152 = vld [vmem:[#allocation2 + $0x18] sm:$0xff]
    %v153 = vld [vmem:[%s4] sm:$0xff]
    %v154 = vld [vmem:[%s4 + $0x8] sm:$0xff]
    %v155 = vld [vmem:[%s4 + $0x10] sm:$0xff]
    %v156 = vld [vmem:[%s4 + $0x18] sm:$0xff]
    %v157 = vld [vmem:[%s6] sm:$0x1]
    %v159 = vperm.slane %v157, 0
    %vm161 = vcmask 261120
    %v163 = vsel %vm161, 0.0, 0
    %165 = vmatpush.msra.mxu0 0.0
    %166 = vmatpush.msra.mxu0 0.0
    %167 = vmatpush.msra.mxu0 0.0
    %168 = vmatpush.msra.mxu0 0.0
    %169 = vmatpush.msra.mxu0 0.0
    %170 = vmatpush.msra.mxu0 0.0
    %171 = vmatpush.msra.mxu0 0.0
    %172 = vmatpush.msra.mxu0 0.0
    %173 = vmatpush.msra.mxu0 0.0
    %174 = vmatpush.msra.mxu0 0.0
    %175 = vmatpush.msra.mxu0 0.0
    %176 = vmatpush.msra.mxu0 0.0
    %177 = vmatpush.msra.mxu0 %v148
    %178 = vmatpush.msra.mxu0 %v147
    %179 = vmatpush.msra.mxu0 %v146
    %180 = vmatpush.msra.mxu0 %v145
    %181 = vmatmul.f32.gmra.mxu0 %v163
    %v182 = vpop.f32.mrf.mxu0
    %v183 = vadd.f32 0.0, %v182
    %184 = vdwg.mxu0
    %v185 = vadd.f32 %v122, %v183
    %v186 = vtanh.pop %v185
    %v188 = vsel %vm161, %v186, 0
    %190 = vmatpush.msra.mxu0 0.0
    %191 = vmatpush.msra.mxu0 0.0
    %192 = vmatpush.msra.mxu0 0.0
    %193 = vmatpush.msra.mxu0 0.0
    %194 = vmatpush.msra.mxu0 0.0
    %195 = vmatpush.msra.mxu0 0.0
    %196 = vmatpush.msra.mxu0 0.0
    %197 = vmatpush.msra.mxu0 0.0
    %198 = vmatpush.msra.mxu0 0.0
    %199 = vmatpush.msra.mxu0 0.0
    %200 = vmatpush.msra.mxu0 0.0
    %201 = vmatpush.msra.mxu0 0.0
    %202 = vmatpush.msra.mxu0 %v156
    %203 = vmatpush.msra.mxu0 %v155
    %204 = vmatpush.msra.mxu0 %v154
    %205 = vmatpush.msra.mxu0 %v153
    %206 = vmatmul.f32.gmra.mxu0 %v188
    %v207 = vpop.f32.mrf.mxu0
    %v208 = vadd.f32 %v159, %v207
    %209 = vdwg.mxu0
    %210 = vmatpush.msra.mxu0 0.0
    %211 = vmatpush.msra.mxu0 0.0
    %212 = vmatpush.msra.mxu0 0.0
    %213 = vmatpush.msra.mxu0 0.0
    %214 = vmatpush.msra.mxu0 0.0
    %215 = vmatpush.msra.mxu0 0.0
    %216 = vmatpush.msra.mxu0 0.0
    %217 = vmatpush.msra.mxu0 0.0
    %218 = vmatpush.msra.mxu0 0.0
    %219 = vmatpush.msra.mxu0 0.0
    %220 = vmatpush.msra.mxu0 0.0
    %221 = vmatpush.msra.mxu0 0.0
    %222 = vmatpush.msra.mxu0 %v152
    %223 = vmatpush.msra.mxu0 %v151
    %224 = vmatpush.msra.mxu0 %v150
    %225 = vmatpush.msra.mxu0 %v149
    %226 = vmatmul.f32.gmra.mxu0 %v163
    %v227 = vpop.f32.mrf.mxu0
    %v228 = vadd.f32 0.0, %v227
    %229 = vdwg.mxu0
    %v230 = vadd.f32 %v208, %v228
    %v231 = vtanh.pop %v230
    %232 = vmatpush.msra.mxu0 0.0
    %233 = vmatpush.msra.mxu0 0.0
    %234 = vmatpush.msra.mxu0 0.0
    %235 = vmatpush.msra.mxu0 0.0
    %236 = vmatpush.msra.mxu0 0.0
    %237 = vmatpush.msra.mxu0 0.0
    %238 = vmatpush.msra.mxu0 0.0
    %239 = vmatpush.msra.mxu0 0.0
    %240 = vmatpush.msra.mxu0 0.0
    %241 = vmatpush.msra.mxu0 0.0
    %242 = vmatpush.msra.mxu0 0.0
    %243 = vmatpush.msra.mxu0 0.0
    %244 = vmatpush.msra.mxu0 %v148
    %245 = vmatpush.msra.mxu0 %v147
    %246 = vmatpush.msra.mxu0 %v146
    %247 = vmatpush.msra.mxu0 %v145
    %248 = vmatmul.f32.gmra.mxu0 %v188
    %v249 = vpop.f32.mrf.mxu0
    %v250 = vadd.f32 0.0, %v249
    %251 = vdwg.mxu0
    %v252 = vadd.f32 %v125, %v250
    %v253 = vtanh.pop %v252
    %v255 = vsel %vm161, %v253, 0
    %257 = vmatpush.msra.mxu0 0.0
    %258 = vmatpush.msra.mxu0 0.0
    %259 = vmatpush.msra.mxu0 0.0
    %260 = vmatpush.msra.mxu0 0.0
    %261 = vmatpush.msra.mxu0 0.0
    %262 = vmatpush.msra.mxu0 0.0
    %263 = vmatpush.msra.mxu0 0.0
    %264 = vmatpush.msra.mxu0 0.0
    %265 = vmatpush.msra.mxu0 0.0
    %266 = vmatpush.msra.mxu0 0.0
    %267 = vmatpush.msra.mxu0 0.0
    %268 = vmatpush.msra.mxu0 0.0
    %269 = vmatpush.msra.mxu0 %v156
    %270 = vmatpush.msra.mxu0 %v155
    %271 = vmatpush.msra.mxu0 %v154
    %272 = vmatpush.msra.mxu0 %v153
    %273 = vmatmul.f32.gmra.mxu0 %v255
    %v274 = vpop.f32.mrf.mxu0
    %v275 = vadd.f32 %v159, %v274
    %276 = vdwg.mxu0
    %v278 = vsel %vm161, %v231, 0
    %280 = vmatpush.msra.mxu0 0.0
    %281 = vmatpush.msra.mxu0 0.0
    %282 = vmatpush.msra.mxu0 0.0
    %283 = vmatpush.msra.mxu0 0.0
    %284 = vmatpush.msra.mxu0 0.0
    %285 = vmatpush.msra.mxu0 0.0
    %286 = vmatpush.msra.mxu0 0.0
    %287 = vmatpush.msra.mxu0 0.0
    %288 = vmatpush.msra.mxu0 0.0
    %289 = vmatpush.msra.mxu0 0.0
    %290 = vmatpush.msra.mxu0 0.0
    %291 = vmatpush.msra.mxu0 0.0
    %292 = vmatpush.msra.mxu0 %v152
    %293 = vmatpush.msra.mxu0 %v151
    %294 = vmatpush.msra.mxu0 %v150
    %295 = vmatpush.msra.mxu0 %v149
    %296 = vmatmul.f32.gmra.mxu0 %v278
    %v297 = vpop.f32.mrf.mxu0
    %v298 = vadd.f32 0.0, %v297
    %299 = vdwg.mxu0
    %v300 = vadd.f32 %v275, %v298
    %v301 = vtanh.pop %v300
    %302 = vmatpush.msra.mxu0 0.0
    %303 = vmatpush.msra.mxu0 0.0
    %304 = vmatpush.msra.mxu0 0.0
    %305 = vmatpush.msra.mxu0 0.0
    %306 = vmatpush.msra.mxu0 0.0
    %307 = vmatpush.msra.mxu0 0.0
    %308 = vmatpush.msra.mxu0 0.0
    %309 = vmatpush.msra.mxu0 0.0
    %310 = vmatpush.msra.mxu0 0.0
    %311 = vmatpush.msra.mxu0 0.0
    %312 = vmatpush.msra.mxu0 0.0
    %313 = vmatpush.msra.mxu0 0.0
    %314 = vmatpush.msra.mxu0 %v148
    %315 = vmatpush.msra.mxu0 %v147
    %316 = vmatpush.msra.mxu0 %v146
    %317 = vmatpush.msra.mxu0 %v145
    %318 = vmatmul.f32.gmra.mxu0 %v255
    %v319 = vpop.f32.mrf.mxu0
    %v320 = vadd.f32 0.0, %v319
    %321 = vdwg.mxu0
    %v322 = vadd.f32 %v128, %v320
    %v323 = vtanh.pop %v322
    %v325 = vsel %vm161, %v323, 0
    %327 = vmatpush.msra.mxu0 0.0
    %328 = vmatpush.msra.mxu0 0.0
    %329 = vmatpush.msra.mxu0 0.0
    %330 = vmatpush.msra.mxu0 0.0
    %331 = vmatpush.msra.mxu0 0.0
    %332 = vmatpush.msra.mxu0 0.0
    %333 = vmatpush.msra.mxu0 0.0
    %334 = vmatpush.msra.mxu0 0.0
    %335 = vmatpush.msra.mxu0 0.0
    %336 = vmatpush.msra.mxu0 0.0
    %337 = vmatpush.msra.mxu0 0.0
    %338 = vmatpush.msra.mxu0 0.0
    %339 = vmatpush.msra.mxu0 %v156
    %340 = vmatpush.msra.mxu0 %v155
    %341 = vmatpush.msra.mxu0 %v154
    %342 = vmatpush.msra.mxu0 %v153
    %343 = vmatmul.f32.gmra.mxu0 %v325
    %v344 = vpop.f32.mrf.mxu0
    %v345 = vadd.f32 %v159, %v344
    %346 = vdwg.mxu0
    %v348 = vsel %vm161, %v301, 0
    %350 = vmatpush.msra.mxu0 0.0
    %351 = vmatpush.msra.mxu0 0.0
    %352 = vmatpush.msra.mxu0 0.0
    %353 = vmatpush.msra.mxu0 0.0
    %354 = vmatpush.msra.mxu0 0.0
    %355 = vmatpush.msra.mxu0 0.0
    %356 = vmatpush.msra.mxu0 0.0
    %357 = vmatpush.msra.mxu0 0.0
    %358 = vmatpush.msra.mxu0 0.0
    %359 = vmatpush.msra.mxu0 0.0
    %360 = vmatpush.msra.mxu0 0.0
    %361 = vmatpush.msra.mxu0 0.0
    %362 = vmatpush.msra.mxu0 %v152
    %363 = vmatpush.msra.mxu0 %v151
    %364 = vmatpush.msra.mxu0 %v150
    %365 = vmatpush.msra.mxu0 %v149
    %366 = vmatmul.f32.gmra.mxu0 %v348
    %v367 = vpop.f32.mrf.mxu0
    %v368 = vadd.f32 0.0, %v367
    %369 = vdwg.mxu0
    %v370 = vadd.f32 %v345, %v368
    %v371 = vtanh.pop %v370
    %372 = vmatpush.msra.mxu0 0.0
    %373 = vmatpush.msra.mxu0 0.0
    %374 = vmatpush.msra.mxu0 0.0
    %375 = vmatpush.msra.mxu0 0.0
    %376 = vmatpush.msra.mxu0 0.0
    %377 = vmatpush.msra.mxu0 0.0
    %378 = vmatpush.msra.mxu0 0.0
    %379 = vmatpush.msra.mxu0 0.0
    %380 = vmatpush.msra.mxu0 0.0
    %381 = vmatpush.msra.mxu0 0.0
    %382 = vmatpush.msra.mxu0 0.0
    %383 = vmatpush.msra.mxu0 0.0
    %384 = vmatpush.msra.mxu0 %v148
    %385 = vmatpush.msra.mxu0 %v147
    %386 = vmatpush.msra.mxu0 %v146
    %387 = vmatpush.msra.mxu0 %v145
    %388 = vmatmul.f32.gmra.mxu0 %v325
    %v389 = vpop.f32.mrf.mxu0
    %v390 = vadd.f32 0.0, %v389
    %391 = vdwg.mxu0
    %v392 = vadd.f32 %v131, %v390
    %v393 = vtanh.pop %v392
    %v395 = vsel %vm161, %v393, 0
    %397 = vmatpush.msra.mxu0 0.0
    %398 = vmatpush.msra.mxu0 0.0
    %399 = vmatpush.msra.mxu0 0.0
    %400 = vmatpush.msra.mxu0 0.0
    %401 = vmatpush.msra.mxu0 0.0
    %402 = vmatpush.msra.mxu0 0.0
    %403 = vmatpush.msra.mxu0 0.0
    %404 = vmatpush.msra.mxu0 0.0
    %405 = vmatpush.msra.mxu0 0.0
    %406 = vmatpush.msra.mxu0 0.0
    %407 = vmatpush.msra.mxu0 0.0
    %408 = vmatpush.msra.mxu0 0.0
    %409 = vmatpush.msra.mxu0 %v156
    %410 = vmatpush.msra.mxu0 %v155
    %411 = vmatpush.msra.mxu0 %v154
    %412 = vmatpush.msra.mxu0 %v153
    %413 = vmatmul.f32.gmra.mxu0 %v395
    %v414 = vpop.f32.mrf.mxu0
    %v415 = vadd.f32 %v159, %v414
    %416 = vdwg.mxu0
    %v418 = vsel %vm161, %v371, 0
    %420 = vmatpush.msra.mxu0 0.0
    %421 = vmatpush.msra.mxu0 0.0
    %422 = vmatpush.msra.mxu0 0.0
    %423 = vmatpush.msra.mxu0 0.0
    %424 = vmatpush.msra.mxu0 0.0
    %425 = vmatpush.msra.mxu0 0.0
    %426 = vmatpush.msra.mxu0 0.0
    %427 = vmatpush.msra.mxu0 0.0
    %428 = vmatpush.msra.mxu0 0.0
    %429 = vmatpush.msra.mxu0 0.0
    %430 = vmatpush.msra.mxu0 0.0
    %431 = vmatpush.msra.mxu0 0.0
    %432 = vmatpush.msra.mxu0 %v152
    %433 = vmatpush.msra.mxu0 %v151
    %434 = vmatpush.msra.mxu0 %v150
    %435 = vmatpush.msra.mxu0 %v149
    %436 = vmatmul.f32.gmra.mxu0 %v418
    %v437 = vpop.f32.mrf.mxu0
    %v438 = vadd.f32 0.0, %v437
    %439 = vdwg.mxu0
    %v440 = vadd.f32 %v415, %v438
    %v441 = vtanh.pop %v440
    %442 = vmatpush.msra.mxu0 0.0
    %443 = vmatpush.msra.mxu0 0.0
    %444 = vmatpush.msra.mxu0 0.0
    %445 = vmatpush.msra.mxu0 0.0
    %446 = vmatpush.msra.mxu0 0.0
    %447 = vmatpush.msra.mxu0 0.0
    %448 = vmatpush.msra.mxu0 0.0
    %449 = vmatpush.msra.mxu0 0.0
    %450 = vmatpush.msra.mxu0 0.0
    %451 = vmatpush.msra.mxu0 0.0
    %452 = vmatpush.msra.mxu0 0.0
    %453 = vmatpush.msra.mxu0 0.0
    %454 = vmatpush.msra.mxu0 %v148
    %455 = vmatpush.msra.mxu0 %v147
    %456 = vmatpush.msra.mxu0 %v146
    %457 = vmatpush.msra.mxu0 %v145
    %458 = vmatmul.f32.gmra.mxu0 %v395
    %v459 = vpop.f32.mrf.mxu0
    %v460 = vadd.f32 0.0, %v459
    %461 = vdwg.mxu0
    %v462 = vadd.f32 %v134, %v460
    %v463 = vtanh.pop %v462
    %v465 = vsel %vm161, %v463, 0
    %467 = vmatpush.msra.mxu0 0.0
    %468 = vmatpush.msra.mxu0 0.0
    %469 = vmatpush.msra.mxu0 0.0
    %470 = vmatpush.msra.mxu0 0.0
    %471 = vmatpush.msra.mxu0 0.0
    %472 = vmatpush.msra.mxu0 0.0
    %473 = vmatpush.msra.mxu0 0.0
    %474 = vmatpush.msra.mxu0 0.0
    %475 = vmatpush.msra.mxu0 0.0
    %476 = vmatpush.msra.mxu0 0.0
    %477 = vmatpush.msra.mxu0 0.0
    %478 = vmatpush.msra.mxu0 0.0
    %479 = vmatpush.msra.mxu0 %v156
    %480 = vmatpush.msra.mxu0 %v155
    %481 = vmatpush.msra.mxu0 %v154
    %482 = vmatpush.msra.mxu0 %v153
    %483 = vmatmul.f32.gmra.mxu0 %v465
    %v484 = vpop.f32.mrf.mxu0
    %v485 = vadd.f32 %v159, %v484
    %486 = vdwg.mxu0
    %v488 = vsel %vm161, %v441, 0
    %490 = vmatpush.msra.mxu0 0.0
    %491 = vmatpush.msra.mxu0 0.0
    %492 = vmatpush.msra.mxu0 0.0
    %493 = vmatpush.msra.mxu0 0.0
    %494 = vmatpush.msra.mxu0 0.0
    %495 = vmatpush.msra.mxu0 0.0
    %496 = vmatpush.msra.mxu0 0.0
    %497 = vmatpush.msra.mxu0 0.0
    %498 = vmatpush.msra.mxu0 0.0
    %499 = vmatpush.msra.mxu0 0.0
    %500 = vmatpush.msra.mxu0 0.0
    %501 = vmatpush.msra.mxu0 0.0
    %502 = vmatpush.msra.mxu0 %v152
    %503 = vmatpush.msra.mxu0 %v151
    %504 = vmatpush.msra.mxu0 %v150
    %505 = vmatpush.msra.mxu0 %v149
    %506 = vmatmul.f32.gmra.mxu0 %v488
    %v507 = vpop.f32.mrf.mxu0
    %v508 = vadd.f32 0.0, %v507
    %509 = vdwg.mxu0
    %v510 = vadd.f32 %v485, %v508
    %v511 = vtanh.pop %v510
    %512 = vmatpush.msra.mxu0 0.0
    %513 = vmatpush.msra.mxu0 0.0
    %514 = vmatpush.msra.mxu0 0.0
    %515 = vmatpush.msra.mxu0 0.0
    %516 = vmatpush.msra.mxu0 0.0
    %517 = vmatpush.msra.mxu0 0.0
    %518 = vmatpush.msra.mxu0 0.0
    %519 = vmatpush.msra.mxu0 0.0
    %520 = vmatpush.msra.mxu0 0.0
    %521 = vmatpush.msra.mxu0 0.0
    %522 = vmatpush.msra.mxu0 0.0
    %523 = vmatpush.msra.mxu0 0.0
    %524 = vmatpush.msra.mxu0 %v148
    %525 = vmatpush.msra.mxu0 %v147
    %526 = vmatpush.msra.mxu0 %v146
    %527 = vmatpush.msra.mxu0 %v145
    %528 = vmatmul.f32.gmra.mxu0 %v465
    %v529 = vpop.f32.mrf.mxu0
    %v530 = vadd.f32 0.0, %v529
    %531 = vdwg.mxu0
    %v532 = vadd.f32 %v137, %v530
    %v533 = vtanh.pop %v532
    %v535 = vsel %vm161, %v533, 0
    %537 = vmatpush.msra.mxu0 0.0
    %538 = vmatpush.msra.mxu0 0.0
    %539 = vmatpush.msra.mxu0 0.0
    %540 = vmatpush.msra.mxu0 0.0
    %541 = vmatpush.msra.mxu0 0.0
    %542 = vmatpush.msra.mxu0 0.0
    %543 = vmatpush.msra.mxu0 0.0
    %544 = vmatpush.msra.mxu0 0.0
    %545 = vmatpush.msra.mxu0 0.0
    %546 = vmatpush.msra.mxu0 0.0
    %547 = vmatpush.msra.mxu0 0.0
    %548 = vmatpush.msra.mxu0 0.0
    %549 = vmatpush.msra.mxu0 %v156
    %550 = vmatpush.msra.mxu0 %v155
    %551 = vmatpush.msra.mxu0 %v154
    %552 = vmatpush.msra.mxu0 %v153
    %553 = vmatmul.f32.gmra.mxu0 %v535
    %v554 = vpop.f32.mrf.mxu0
    %v555 = vadd.f32 %v159, %v554
    %556 = vdwg.mxu0
    %v558 = vsel %vm161, %v511, 0
    %560 = vmatpush.msra.mxu0 0.0
    %561 = vmatpush.msra.mxu0 0.0
    %562 = vmatpush.msra.mxu0 0.0
    %563 = vmatpush.msra.mxu0 0.0
    %564 = vmatpush.msra.mxu0 0.0
    %565 = vmatpush.msra.mxu0 0.0
    %566 = vmatpush.msra.mxu0 0.0
    %567 = vmatpush.msra.mxu0 0.0
    %568 = vmatpush.msra.mxu0 0.0
    %569 = vmatpush.msra.mxu0 0.0
    %570 = vmatpush.msra.mxu0 0.0
    %571 = vmatpush.msra.mxu0 0.0
    %572 = vmatpush.msra.mxu0 %v152
    %573 = vmatpush.msra.mxu0 %v151
    %574 = vmatpush.msra.mxu0 %v150
    %575 = vmatpush.msra.mxu0 %v149
    %576 = vmatmul.f32.gmra.mxu0 %v558
    %v577 = vpop.f32.mrf.mxu0
    %v578 = vadd.f32 0.0, %v577
    %579 = vdwg.mxu0
    %v580 = vadd.f32 %v555, %v578
    %v581 = vtanh.pop %v580
    %582 = vmatpush.msra.mxu0 0.0
    %583 = vmatpush.msra.mxu0 0.0
    %584 = vmatpush.msra.mxu0 0.0
    %585 = vmatpush.msra.mxu0 0.0
    %586 = vmatpush.msra.mxu0 0.0
    %587 = vmatpush.msra.mxu0 0.0
    %588 = vmatpush.msra.mxu0 0.0
    %589 = vmatpush.msra.mxu0 0.0
    %590 = vmatpush.msra.mxu0 0.0
    %591 = vmatpush.msra.mxu0 0.0
    %592 = vmatpush.msra.mxu0 0.0
    %593 = vmatpush.msra.mxu0 0.0
    %594 = vmatpush.msra.mxu0 %v148
    %595 = vmatpush.msra.mxu0 %v147
    %596 = vmatpush.msra.mxu0 %v146
    %597 = vmatpush.msra.mxu0 %v145
    %598 = vmatmul.f32.gmra.mxu0 %v535
    %v599 = vpop.f32.mrf.mxu0
    %v600 = vadd.f32 0.0, %v599
    %601 = vdwg.mxu0
    %v602 = vadd.f32 %v140, %v600
    %v603 = vtanh.pop %v602
    %v605 = vsel %vm161, %v603, 0
    %607 = vmatpush.msra.mxu0 0.0
    %608 = vmatpush.msra.mxu0 0.0
    %609 = vmatpush.msra.mxu0 0.0
    %610 = vmatpush.msra.mxu0 0.0
    %611 = vmatpush.msra.mxu0 0.0
    %612 = vmatpush.msra.mxu0 0.0
    %613 = vmatpush.msra.mxu0 0.0
    %614 = vmatpush.msra.mxu0 0.0
    %615 = vmatpush.msra.mxu0 0.0
    %616 = vmatpush.msra.mxu0 0.0
    %617 = vmatpush.msra.mxu0 0.0
    %618 = vmatpush.msra.mxu0 0.0
    %619 = vmatpush.msra.mxu0 %v156
    %620 = vmatpush.msra.mxu0 %v155
    %621 = vmatpush.msra.mxu0 %v154
    %622 = vmatpush.msra.mxu0 %v153
    %623 = vmatmul.f32.gmra.mxu0 %v605
    %v624 = vpop.f32.mrf.mxu0
    %v625 = vadd.f32 %v159, %v624
    %626 = vdwg.mxu0
    %v628 = vsel %vm161, %v581, 0
    %630 = vmatpush.msra.mxu0 0.0
    %631 = vmatpush.msra.mxu0 0.0
    %632 = vmatpush.msra.mxu0 0.0
    %633 = vmatpush.msra.mxu0 0.0
    %634 = vmatpush.msra.mxu0 0.0
    %635 = vmatpush.msra.mxu0 0.0
    %636 = vmatpush.msra.mxu0 0.0
    %637 = vmatpush.msra.mxu0 0.0
    %638 = vmatpush.msra.mxu0 0.0
    %639 = vmatpush.msra.mxu0 0.0
    %640 = vmatpush.msra.mxu0 0.0
    %641 = vmatpush.msra.mxu0 0.0
    %642 = vmatpush.msra.mxu0 %v152
    %643 = vmatpush.msra.mxu0 %v151
    %644 = vmatpush.msra.mxu0 %v150
    %645 = vmatpush.msra.mxu0 %v149
    %646 = vmatmul.f32.gmra.mxu0 %v628
    %v647 = vpop.f32.mrf.mxu0
    %v648 = vadd.f32 0.0, %v647
    %649 = vdwg.mxu0
    %v650 = vadd.f32 %v625, %v648
    %v651 = vtanh.pop %v650
    %652 = vmatpush.msra.mxu0 0.0
    %653 = vmatpush.msra.mxu0 0.0
    %654 = vmatpush.msra.mxu0 0.0
    %655 = vmatpush.msra.mxu0 0.0
    %656 = vmatpush.msra.mxu0 0.0
    %657 = vmatpush.msra.mxu0 0.0
    %658 = vmatpush.msra.mxu0 0.0
    %659 = vmatpush.msra.mxu0 0.0
    %660 = vmatpush.msra.mxu0 0.0
    %661 = vmatpush.msra.mxu0 0.0
    %662 = vmatpush.msra.mxu0 0.0
    %663 = vmatpush.msra.mxu0 0.0
    %664 = vmatpush.msra.mxu0 %v148
    %665 = vmatpush.msra.mxu0 %v147
    %666 = vmatpush.msra.mxu0 %v146
    %667 = vmatpush.msra.mxu0 %v145
    %668 = vmatmul.f32.gmra.mxu0 %v605
    %v669 = vpop.f32.mrf.mxu0
    %v670 = vadd.f32 0.0, %v669
    %671 = vdwg.mxu0
    %v672 = vadd.f32 %v143, %v670
    %v673 = vtanh.pop %v672
    %v675 = vsel %vm161, %v673, 0
    %677 = vmatpush.msra.mxu0 0.0
    %678 = vmatpush.msra.mxu0 0.0
    %679 = vmatpush.msra.mxu0 0.0
    %680 = vmatpush.msra.mxu0 0.0
    %681 = vmatpush.msra.mxu0 0.0
    %682 = vmatpush.msra.mxu0 0.0
    %683 = vmatpush.msra.mxu0 0.0
    %684 = vmatpush.msra.mxu0 0.0
    %685 = vmatpush.msra.mxu0 0.0
    %686 = vmatpush.msra.mxu0 0.0
    %687 = vmatpush.msra.mxu0 0.0
    %688 = vmatpush.msra.mxu0 0.0
    %689 = vmatpush.msra.mxu0 %v156
    %690 = vmatpush.msra.mxu0 %v155
    %691 = vmatpush.msra.mxu0 %v154
    %692 = vmatpush.msra.mxu0 %v153
    %693 = vmatmul.f32.gmra.mxu0 %v675
    %v694 = vpop.f32.mrf.mxu0
    %v695 = vadd.f32 %v159, %v694
    %696 = vdwg.mxu0
    %v698 = vsel %vm161, %v651, 0
    %700 = vmatpush.msra.mxu0 0.0
    %701 = vmatpush.msra.mxu0 0.0
    %702 = vmatpush.msra.mxu0 0.0
    %703 = vmatpush.msra.mxu0 0.0
    %704 = vmatpush.msra.mxu0 0.0
    %705 = vmatpush.msra.mxu0 0.0
    %706 = vmatpush.msra.mxu0 0.0
    %707 = vmatpush.msra.mxu0 0.0
    %708 = vmatpush.msra.mxu0 0.0
    %709 = vmatpush.msra.mxu0 0.0
    %710 = vmatpush.msra.mxu0 0.0
    %711 = vmatpush.msra.mxu0 0.0
    %712 = vmatpush.msra.mxu0 %v152
    %713 = vmatpush.msra.mxu0 %v151
    %714 = vmatpush.msra.mxu0 %v150
    %715 = vmatpush.msra.mxu0 %v149
    %716 = vmatmul.f32.gmra.mxu0 %v698
    %v717 = vpop.f32.mrf.mxu0
    %v718 = vadd.f32 0.0, %v717
    %719 = vdwg.mxu0
    %v720 = vadd.f32 %v695, %v718
    %v721 = vtanh.pop %v720
    %v722 = vmax.f32 %v721, 0.0
    %v723 = vld [vmem:[#allocation5] sm:$0xff]
    %v724 = vld [vmem:[#allocation5 + $0x8] sm:$0xff]
    %v725 = vld [vmem:[#allocation5 + $0x10] sm:$0xff]
    %v726 = vld [vmem:[#allocation5 + $0x18] sm:$0xff]
    %v727 = vld [vmem:[%s8] sm:$0x1]
    %v729 = vperm.slane %v727, 0
    %v732 = vsel %vm161, %v722, 0
    %734 = vmatpush.msra.mxu0 0.0
    %735 = vmatpush.msra.mxu0 0.0
    %736 = vmatpush.msra.mxu0 0.0
    %737 = vmatpush.msra.mxu0 0.0
    %738 = vmatpush.msra.mxu0 0.0
    %739 = vmatpush.msra.mxu0 0.0
    %740 = vmatpush.msra.mxu0 0.0
    %741 = vmatpush.msra.mxu0 0.0
    %742 = vmatpush.msra.mxu0 0.0
    %743 = vmatpush.msra.mxu0 0.0
    %744 = vmatpush.msra.mxu0 0.0
    %745 = vmatpush.msra.mxu0 0.0
    %746 = vmatpush.msra.mxu0 %v726
    %747 = vmatpush.msra.mxu0 %v725
    %748 = vmatpush.msra.mxu0 %v724
    %749 = vmatpush.msra.mxu0 %v723
    %750 = vmatmul.f32.gmra.mxu0 %v732
    %v751 = vpop.f32.mrf.mxu0
    %v752 = vadd.f32 %v729, %v751
    %753 = vdwg.mxu0
    %754 = vst [vmem:[#allocation7] sm:$0xff] %v752
    // Predicated region
    $region46: #{tpu_custom_call.1} parent=1 // pred_check
      _
    $region47: #{tpu_custom_call.1} parent=1 // pred_check_branch
      %756 = sbr.rel (0) target = $region49
    $region48: #{tpu_custom_call.1} parent=1 // pred_region
      %758 = vsyncadd [#allocation4], 0
      %s760 = sshll.u32 [#allocation7], 4
      %s761 = int_to_ptr.vmem [resolvable:$true] %s760
      %s762 = sshll.u32 %s9, 4
      %s763 = int_to_ptr.hbm [resolvable:$true] %s762
      %765 = dma.vmem_to_hbm [thread:$0]  %s761, 128, %s763, [#allocation4]
    $region49: #{tpu_custom_call.1} parent=1 // pred_fallthru
      _
    // Predicated region
    $region50: #{tpu_custom_call.1} parent=1 // pred_check
      _
    $region51: #{tpu_custom_call.1} parent=1 // pred_check_branch
      %767 = sbr.rel (0) target = $region53
    $region52: #{tpu_custom_call.1} parent=1 // pred_region
      %769 = dma.done [#allocation4], 128
    $region53: #{tpu_custom_call.1} parent=1 // pred_fallthru
      _
    %770 = vsyncpa [#allocation3], 1
    %771 = vsyncpa [#allocation6], 1
    %772 = vsyncpa [#allocation4], 1

</llo_original>
